<compile_context>
chip_gen: v7x
topology: tpu7x:2x2x1
jax: 0.10.0
libtpu: 0.0.40
codegen_flags: <defaults>
</compile_context>

<pallas_src>
import math

import jax
import jax.numpy as jnp
from jax.experimental import pallas as pl
from jax.experimental.pallas import tpu as pltpu


def make_sinusoidal_table(time_steps: int, embed_dim: int) -> jnp.ndarray:
    """Deterministic parameter init matching the PyTorch __init__."""
    assert embed_dim % 2 == 0, "embed_dim must be even (same assumption as the PyTorch module)"
    position = jnp.arange(time_steps, dtype=jnp.float32)[:, None]          # (T, 1)
    div = jnp.exp(
        jnp.arange(0, embed_dim, 2, dtype=jnp.float32)
        * -(math.log(10000.0) / embed_dim)
    )                                                                      # (D/2,)
    emb = jnp.zeros((time_steps, embed_dim), dtype=jnp.float32)
    emb = emb.at[:, 0::2].set(jnp.sin(position * div))
    emb = emb.at[:, 1::2].set(jnp.cos(position * div))
    return emb


def _gather_rows_kernel(t_ref, table_hbm, out_ref, rows_vmem, sem):
    # t_ref:     (B,) int32 timestep indices in SMEM (scalar prefetch).
    # table_hbm: (T, D) sinusoidal table, left in HBM (memory_space=pl.ANY).
    # out_ref:   (B, D) output block in VMEM.
    # rows_vmem: (B, D) VMEM scratch landing pad for the row DMAs.
    # sem:       (B,) DMA completion semaphores.
    B = out_ref.shape[0]

    # Static unroll over the (small, static) batch: issue all row DMAs first so
    # they overlap, then wait on all of them.
    copies = []
    for i in range(B):
        cp = pltpu.make_async_copy(
            table_hbm.at[pl.ds(t_ref[i], 1), :],   # (1, D) row t[i] from HBM
            rows_vmem.at[pl.ds(i, 1), :],          # (1, D) slot i in VMEM
            sem.at[i],
        )
        cp.start()
        copies.append(cp)
    for cp in copies:
        cp.wait()

    # One contiguous block store; the pipeline writes it back as a single DMA.
    out_ref[...] = rows_vmem[...]


def sinusoidal_embeddings_forward(t: jnp.ndarray, table: jnp.ndarray) -> jnp.ndarray:
    """Equivalent of SinusoidalEmbeddings.forward: table[t][:, :, None, None]."""
    B = t.shape[0]
    T, D = table.shape
    itemsize = jnp.dtype(table.dtype).itemsize

    # No runtime OOB check on DMAs/refs: clamp indices (PyTorch would raise).
    t = jnp.clip(t.astype(jnp.int32), 0, T - 1)

    out2d = pl.pallas_call(
        _gather_rows_kernel,
        out_shape=jax.ShapeDtypeStruct((B, D), table.dtype),
        grid_spec=pltpu.PrefetchScalarGridSpec(
            num_scalar_prefetch=1,      # t -> SMEM, readable inside the kernel
            grid=(1,),                  # single step: one launch, one output writeback
            in_specs=[
                # Table stays in HBM; rows are gathered with manual DMAs.
                pl.BlockSpec(memory_space=pl.ANY),
            ],
            out_specs=pl.BlockSpec((B, D), lambda i, t_ref: (0, 0)),
            scratch_shapes=[
                pltpu.VMEM((B, D), table.dtype),
                pltpu.SemaphoreType.DMA((B,)),
            ],
        ),
        compiler_params=pltpu.CompilerParams(
            dimension_semantics=("arbitrary",)),
        cost_estimate=pl.CostEstimate(
            flops=0,
            transcendentals=0,
            bytes_accessed=2 * B * D * itemsize,   # B rows in + (B, D) out
        ),
    )(t, table)

    # glue: add trailing singleton spatial dims -> (B, D, 1, 1)
    return out2d[:, :, None, None]


if __name__ == "__main__":
    time_steps = 64
    embed_dim = 32
    batch = 2

    table = make_sinusoidal_table(time_steps, embed_dim)

    key = jax.random.PRNGKey(0)
    t = jax.random.randint(key, (batch,), 0, time_steps, dtype=jnp.int32)

    out = sinusoidal_embeddings_forward(t, table)
    out = jax.block_until_ready(out)

    # Reference check (pure JAX) against the kernel.
    ref = table[t][:, :, None, None]
    assert out.shape == (batch, embed_dim, 1, 1), out.shape
    assert out.dtype == jnp.float32
    assert jnp.allclose(out, ref, atol=0, rtol=0), "mismatch vs reference"

    print("KERNEL_OK")
</pallas_src>

<mosaic_0001>
module attributes {stable_mosaic.version = 11 : i64} {
  func.func @_gather_rows_kernel(%arg0: i32, %arg1: memref<2xi32, #tpu.memory_space<smem>>, %arg2: memref<64x32xf32, #tpu.memory_space<any>>, %arg3: memref<2x32xf32, #tpu.memory_space<vmem>>, %arg4: memref<2x32xf32, #tpu.memory_space<vmem>>, %arg5: memref<2x!tpu.dma_semaphore, #tpu.memory_space<semaphore_mem>>) attributes {dimension_semantics = [#tpu.dimension_semantics<arbitrary>], iteration_bounds = array<i64: 1>, scalar_prefetch = 1 : i64, scratch_operands = 2 : i64, tpu.core_type = #tpu.core_type<tc>, window_params = [{}, {pipeline_mode = #tpu.pipeline_mode<synchronous>, transform_indices = @transform_1, window_bounds = array<i64: 2, 32>}]} {
    %c0 = arith.constant 0 : index
    %0 = memref.load %arg1[%c0] : memref<2xi32, #tpu.memory_space<smem>>
    %c0_i32 = arith.constant 0 : i32
    %c0_i32_0 = arith.constant 0 : i32
    %1 = tpu.memref_slice %arg2[%0, %c0_i32_0] : memref<64x32xf32, #tpu.memory_space<any>> -> memref<1x32xf32, #tpu.memory_space<any>>
    %c0_i32_1 = arith.constant 0 : i32
    %c0_i32_2 = arith.constant 0 : i32
    %2 = tpu.memref_slice %arg4[%c0_i32_1, %c0_i32_2] : memref<2x32xf32, #tpu.memory_space<vmem>> -> memref<1x32xf32, #tpu.memory_space<vmem>>
    %3 = tpu.memref_slice %arg5[%c0_i32] : memref<2x!tpu.dma_semaphore, #tpu.memory_space<semaphore_mem>> -> memref<1x!tpu.dma_semaphore, #tpu.memory_space<semaphore_mem>>
    %4 = tpu.memref_squeeze %3 : memref<1x!tpu.dma_semaphore, #tpu.memory_space<semaphore_mem>> -> memref<!tpu.dma_semaphore, #tpu.memory_space<semaphore_mem>>
    tpu.enqueue_dma source(%1 : memref<1x32xf32, #tpu.memory_space<any>>) target(%2 : memref<1x32xf32, #tpu.memory_space<vmem>>) target_semaphore(%4 : memref<!tpu.dma_semaphore, #tpu.memory_space<semaphore_mem>>)
    %c1 = arith.constant 1 : index
    %5 = memref.load %arg1[%c1] : memref<2xi32, #tpu.memory_space<smem>>
    %c1_i32 = arith.constant 1 : i32
    %c0_i32_3 = arith.constant 0 : i32
    %6 = tpu.memref_slice %arg2[%5, %c0_i32_3] : memref<64x32xf32, #tpu.memory_space<any>> -> memref<1x32xf32, #tpu.memory_space<any>>
    %c1_i32_4 = arith.constant 1 : i32
    %c0_i32_5 = arith.constant 0 : i32
    %7 = tpu.memref_slice %arg4[%c1_i32_4, %c0_i32_5] : memref<2x32xf32, #tpu.memory_space<vmem>> -> memref<1x32xf32, #tpu.memory_space<vmem>>
    %8 = tpu.memref_slice %arg5[%c1_i32] : memref<2x!tpu.dma_semaphore, #tpu.memory_space<semaphore_mem>> -> memref<1x!tpu.dma_semaphore, #tpu.memory_space<semaphore_mem>>
    %9 = tpu.memref_squeeze %8 : memref<1x!tpu.dma_semaphore, #tpu.memory_space<semaphore_mem>> -> memref<!tpu.dma_semaphore, #tpu.memory_space<semaphore_mem>>
    tpu.enqueue_dma source(%6 : memref<1x32xf32, #tpu.memory_space<any>>) target(%7 : memref<1x32xf32, #tpu.memory_space<vmem>>) target_semaphore(%9 : memref<!tpu.dma_semaphore, #tpu.memory_space<semaphore_mem>>)
    %c0_i32_6 = arith.constant 0 : i32
    %c0_i32_7 = arith.constant 0 : i32
    %10 = tpu.memref_slice %arg2[%0, %c0_i32_7] : memref<64x32xf32, #tpu.memory_space<any>> -> memref<1x32xf32, #tpu.memory_space<any>>
    %c0_i32_8 = arith.constant 0 : i32
    %c0_i32_9 = arith.constant 0 : i32
    %11 = tpu.memref_slice %arg4[%c0_i32_8, %c0_i32_9] : memref<2x32xf32, #tpu.memory_space<vmem>> -> memref<1x32xf32, #tpu.memory_space<vmem>>
    %12 = tpu.memref_slice %arg5[%c0_i32_6] : memref<2x!tpu.dma_semaphore, #tpu.memory_space<semaphore_mem>> -> memref<1x!tpu.dma_semaphore, #tpu.memory_space<semaphore_mem>>
    %13 = tpu.memref_squeeze %12 : memref<1x!tpu.dma_semaphore, #tpu.memory_space<semaphore_mem>> -> memref<!tpu.dma_semaphore, #tpu.memory_space<semaphore_mem>>
    tpu.wait_dma2 semaphore(%13 : memref<!tpu.dma_semaphore, #tpu.memory_space<semaphore_mem>>) src(%10 : memref<1x32xf32, #tpu.memory_space<any>>) dst(%11 : memref<1x32xf32, #tpu.memory_space<vmem>>)
    %c1_i32_10 = arith.constant 1 : i32
    %c0_i32_11 = arith.constant 0 : i32
    %14 = tpu.memref_slice %arg2[%5, %c0_i32_11] : memref<64x32xf32, #tpu.memory_space<any>> -> memref<1x32xf32, #tpu.memory_space<any>>
    %c1_i32_12 = arith.constant 1 : i32
    %c0_i32_13 = arith.constant 0 : i32
    %15 = tpu.memref_slice %arg4[%c1_i32_12, %c0_i32_13] : memref<2x32xf32, #tpu.memory_space<vmem>> -> memref<1x32xf32, #tpu.memory_space<vmem>>
    %16 = tpu.memref_slice %arg5[%c1_i32_10] : memref<2x!tpu.dma_semaphore, #tpu.memory_space<semaphore_mem>> -> memref<1x!tpu.dma_semaphore, #tpu.memory_space<semaphore_mem>>
    %17 = tpu.memref_squeeze %16 : memref<1x!tpu.dma_semaphore, #tpu.memory_space<semaphore_mem>> -> memref<!tpu.dma_semaphore, #tpu.memory_space<semaphore_mem>>
    tpu.wait_dma2 semaphore(%17 : memref<!tpu.dma_semaphore, #tpu.memory_space<semaphore_mem>>) src(%14 : memref<1x32xf32, #tpu.memory_space<any>>) dst(%15 : memref<1x32xf32, #tpu.memory_space<vmem>>)
    %c0_14 = arith.constant 0 : index
    %c0_15 = arith.constant 0 : index
    %18 = vector.load %arg4[%c0_14, %c0_15] : memref<2x32xf32, #tpu.memory_space<vmem>>, vector<2x32xf32>
    %c0_16 = arith.constant 0 : index
    %c0_17 = arith.constant 0 : index
    %19 = vector.load %arg3[%c0_16, %c0_17] : memref<2x32xf32, #tpu.memory_space<vmem>>, vector<2x32xf32>
    tpu.vector_store %arg3[%c0_16, %c0_17], %18 {strides = array<i32>} : memref<2x32xf32, #tpu.memory_space<vmem>>, vector<2x32xf32>,
    return
  }
  func.func @transform_1(%arg0: i32, %arg1: memref<2xi32, #tpu.memory_space<smem>>) -> (i32, i32) {
    %c0_i32 = arith.constant 0 : i32
    %c0_i32_0 = arith.constant 0 : i32
    %c0_i32_1 = arith.constant 0 : i32
    return %c0_i32, %c0_i32_0 : i32, i32
  }
}

</mosaic_0001>

<llo_original>
// kernel: tpu_custom_call.1
$region0: #{tpu_custom_call.1}
  #allocation0 [shape = 'u32[]', space=smem, size = 0x4, offset = 0x4, fixed_abs, tag = 'smem constant byte address 0x4 - core index']
  #allocation1 [shape = 'u32[144,128]{1,0:T(1,128)}', space=vmem, size = 0x12000, scoped, tag = 'internal scratch']
  #allocation2 [shape = 'f32[2,32]{1,0:T(2,128)}', space=vmem, size = 0x400, scoped, tag = 'scratch operand']
  #allocation3 [shape = 's32[2]{0}', space=sflag, size = 0x8, scoped, tag = 'scratch operand']
  #allocation4 [shape = 's32[1]{0}', space=sflag, size = 0x4, scoped, tag = 'scoped memory for tpu_custom_call.1']
  #allocation5 [shape = 'u8[512]{0}', space=smem, size = 0x200, scoped, tag = 'prefetched SMEM operand 0']
  #allocation8 [shape = 's32[]', space=sflag, size = 0x4, offset = 0, fixed_abs, tag = 'sflag constant byte address 0x0 - dummy sync flag']
  #allocation9 [shape = 's32[]', space=sflag, size = 0x4, offset = 0, fixed_abs, tag = 'sflag constant byte address 0x0 - dummy sync flag']
  %s0 = inlined_call_operand.vmem [shape: s32[2], index: 0, kind: input, shape index: {}]
  %s1 = inlined_call_operand.vmem [shape: f32[64,32], index: 1, kind: input, shape index: {}]
  %s2 = inlined_call_operand.hbm [shape: f32[2,32], index: 2, kind: output, shape index: {}]
  %s3 = sld [smem:[#allocation0]]
  $region70: #{tpu_custom_call.1} parent=0
    _
  %s5 = ssub.s32 1, %s3
  %s6 = scalar_select 0, %s5, %s3
  %s7 = sshll.u32 %s0, 4
  %s8 = int_to_ptr.vmem [resolvable:$true] %s7
  %10 = dma.vmem_to_smem %s8, 16, [#allocation5], [#allocation4]
  %11 = dma.done [#allocation4], 16
  %12 = sfence
  $region1: #{tpu_custom_call.1} parent=0
    #allocation6 [shape = 'u8[1024]{0}', space=vmem, size = 0x400, scoped, tag = 'output window, operand 0, single buffered']
    #allocation7 [shape = 's32[1]{0}', space=sflag, size = 0x4, scoped, tag = 'scoped memory for tpu_custom_call.1']
    %13 = vsyncpa [#allocation7], 0
    %s14 = sld [smem:[#allocation5]]
    %s15 = scalar_lea.vmem %s1, %s14
    %p17 = scmp.lt.u32.totalorder 1, 8
    %p18 = pneg %p17
    // Predicated region
    $region2: #{tpu_custom_call.1} parent=1 // pred_check
      _
    $region3: #{tpu_custom_call.1} parent=1 // pred_check_branch
      %20 = sbr.rel (%p17) target = $region5
    $region4: #{tpu_custom_call.1} parent=1 // pred_region
      %s35 = sand.u32 1, 7
      %p36 = scmp.eq.s32.totalorder %s35, 0
      %p37 = pneg %p36
      // Predicated region
      $region17: #{tpu_custom_call.1} parent=4 // pred_check
        _
      $region18: #{tpu_custom_call.1} parent=4 // pred_check_branch
        %39 = sbr.rel (%p36) target = $region20
      $region19: #{tpu_custom_call.1} parent=4 // pred_region
        %s40 = sand.u32 1, 7
        %s41 = ssub.s32 1, %s40
        %s42 = scalar_lea.vmem %s15, %s41
        %s43 = ssub.s32 1, %s40
        %s44 = scalar_lea.vmem [#allocation2], %s43
        %s45 = sshllo.u32 0, %s40
        loop: start=0, step=1, limit=1
        $region21: #{tpu_custom_call.1} parent=19 // loop_pre_header
          _
        $region22: #{tpu_custom_call.1} parent=19 // loop_header
          %s47 = sphi 0, %s51
          %p48 = scmp.ge.s32.totalorder %s47, 1
          %s52 = sphi %s42, %s42
          %s53 = sphi %s44, %s44
        $region23: #{tpu_custom_call.1} parent=19 // loop_header_branch
          %50 = sbr.rel (%p48) target = $region27
        $region24: #{tpu_custom_call.1} parent=19 // loop_body
          %v54 = vld [vmem:[%s52] sm:%s45]
          %55 = vst [vmem:[%s53] sm:%s45] %v54
        $region25: #{tpu_custom_call.1} parent=19 // loop_footer
          %s51 = sadd.s32 1, %s47
        $region26: #{tpu_custom_call.1} parent=19 // loop_footer_branch
          %46 = sbr.rel target = $region22
        $region27: #{tpu_custom_call.1} parent=19 // loop_exit
          _
      $region20: #{tpu_custom_call.1} parent=4 // pred_fallthru
        _
    $region5: #{tpu_custom_call.1} parent=1 // pred_fallthru
      _
    // Predicated region
    $region6: #{tpu_custom_call.1} parent=1 // pred_check
      %p21 = pneg %p17
    $region7: #{tpu_custom_call.1} parent=1 // pred_check_branch
      %23 = sbr.rel (%p21) target = $region9
    $region8: #{tpu_custom_call.1} parent=1 // pred_region
      %s24 = sshllo.u32 0, 1
      loop: start=0, step=1, limit=1
      $region10: #{tpu_custom_call.1} parent=8 // loop_pre_header
        _
      $region11: #{tpu_custom_call.1} parent=8 // loop_header
        %s26 = sphi 0, %s30
        %p27 = scmp.ge.s32.totalorder %s26, 1
        %s31 = sphi %s15, %s15
        %s32 = sphi [#allocation2], [#allocation2]
      $region12: #{tpu_custom_call.1} parent=8 // loop_header_branch
        %29 = sbr.rel (%p27) target = $region16
      $region13: #{tpu_custom_call.1} parent=8 // loop_body
        %v33 = vld [vmem:[%s31] sm:%s24]
        %34 = vst [vmem:[%s32] sm:%s24] %v33
      $region14: #{tpu_custom_call.1} parent=8 // loop_footer
        %s30 = sadd.s32 1, %s26
      $region15: #{tpu_custom_call.1} parent=8 // loop_footer_branch
        %25 = sbr.rel target = $region11
      $region16: #{tpu_custom_call.1} parent=8 // loop_exit
        _
    $region9: #{tpu_custom_call.1} parent=1 // pred_fallthru
      _
    // Predicated region
    $region28: #{tpu_custom_call.1} parent=1 // pred_check
      _
    $region29: #{tpu_custom_call.1} parent=1 // pred_check_branch
      %58 = sbr.rel (0) target = $region31
    $region30: #{tpu_custom_call.1} parent=1 // pred_region
      %59 = vsyncadd [#allocation3], 16
    $region31: #{tpu_custom_call.1} parent=1 // pred_fallthru
      _
    %s60 = sld [smem:[#allocation5 + $0x1]]
    %s61 = scalar_lea.vmem %s1, %s60
    %s62 = scalar_lea.vmem [#allocation2], 1
    %s63 = scalar_lea.sflag [#allocation3], 1
    %p65 = scmp.lt.u32.totalorder 1, 8
    %p66 = pneg %p65
    // Predicated region
    $region32: #{tpu_custom_call.1} parent=1 // pred_check
      _
    $region33: #{tpu_custom_call.1} parent=1 // pred_check_branch
      %68 = sbr.rel (%p65) target = $region35
    $region34: #{tpu_custom_call.1} parent=1 // pred_region
      %s83 = sand.u32 1, 7
      %p84 = scmp.eq.s32.totalorder %s83, 0
      %p85 = pneg %p84
      // Predicated region
      $region47: #{tpu_custom_call.1} parent=34 // pred_check
        _
      $region48: #{tpu_custom_call.1} parent=34 // pred_check_branch
        %87 = sbr.rel (%p84) target = $region50
      $region49: #{tpu_custom_call.1} parent=34 // pred_region
        %s88 = sand.u32 1, 7
        %s89 = ssub.s32 1, %s88
        %s90 = scalar_lea.vmem %s61, %s89
        %s91 = ssub.s32 1, %s88
        %s92 = scalar_lea.vmem %s62, %s91 [#allocation2]
        %s93 = sshllo.u32 0, %s88
        loop: start=0, step=1, limit=1
        $region51: #{tpu_custom_call.1} parent=49 // loop_pre_header
          _
        $region52: #{tpu_custom_call.1} parent=49 // loop_header
          %s95 = sphi 0, %s99
          %p96 = scmp.ge.s32.totalorder %s95, 1
          %s100 = sphi %s90, %s90
          %s101 = sphi %s92, %s92
        $region53: #{tpu_custom_call.1} parent=49 // loop_header_branch
          %98 = sbr.rel (%p96) target = $region57
        $region54: #{tpu_custom_call.1} parent=49 // loop_body
          %v102 = vld [vmem:[%s100] sm:%s93]
          %103 = vst [vmem:[%s101] sm:%s93] %v102
        $region55: #{tpu_custom_call.1} parent=49 // loop_footer
          %s99 = sadd.s32 1, %s95
        $region56: #{tpu_custom_call.1} parent=49 // loop_footer_branch
          %94 = sbr.rel target = $region52
        $region57: #{tpu_custom_call.1} parent=49 // loop_exit
          _
      $region50: #{tpu_custom_call.1} parent=34 // pred_fallthru
        _
    $region35: #{tpu_custom_call.1} parent=1 // pred_fallthru
      _
    // Predicated region
    $region36: #{tpu_custom_call.1} parent=1 // pred_check
      %p69 = pneg %p65
    $region37: #{tpu_custom_call.1} parent=1 // pred_check_branch
      %71 = sbr.rel (%p69) target = $region39
    $region38: #{tpu_custom_call.1} parent=1 // pred_region
      %s72 = sshllo.u32 0, 1
      loop: start=0, step=1, limit=1
      $region40: #{tpu_custom_call.1} parent=38 // loop_pre_header
        _
      $region41: #{tpu_custom_call.1} parent=38 // loop_header
        %s74 = sphi 0, %s78
        %p75 = scmp.ge.s32.totalorder %s74, 1
        %s79 = sphi %s61, %s61
        %s80 = sphi %s62, %s62
      $region42: #{tpu_custom_call.1} parent=38 // loop_header_branch
        %77 = sbr.rel (%p75) target = $region46
      $region43: #{tpu_custom_call.1} parent=38 // loop_body
        %v81 = vld [vmem:[%s79] sm:%s72]
        %82 = vst [vmem:[%s80] sm:%s72] %v81
      $region44: #{tpu_custom_call.1} parent=38 // loop_footer
        %s78 = sadd.s32 1, %s74
      $region45: #{tpu_custom_call.1} parent=38 // loop_footer_branch
        %73 = sbr.rel target = $region41
      $region46: #{tpu_custom_call.1} parent=38 // loop_exit
        _
    $region39: #{tpu_custom_call.1} parent=1 // pred_fallthru
      _
    // Predicated region
    $region58: #{tpu_custom_call.1} parent=1 // pred_check
      _
    $region59: #{tpu_custom_call.1} parent=1 // pred_check_branch
      %106 = sbr.rel (0) target = $region61
    $region60: #{tpu_custom_call.1} parent=1 // pred_region
      %107 = vsyncadd %s63, 16
    $region61: #{tpu_custom_call.1} parent=1 // pred_fallthru
      _
    %s108 = smul.u32 1, 1
    %s109 = sshll.u32 %s108, 4
    %110 = dma.done [#allocation3], %s109
    %s111 = sshll.u32 %s108, 4
    %112 = dma.done %s63, %s111
    %v113 = vld [vmem:[#allocation2] sm:$0x3]
    %vm114 = vcmask 254976
    %115 = vst.msk [vmem:[#allocation6] sm:$0x3] %vm114, %v113
    // Predicated region
    $region62: #{tpu_custom_call.1} parent=1 // pred_check
      _
    $region63: #{tpu_custom_call.1} parent=1 // pred_check_branch
      %117 = sbr.rel (0) target = $region65
    $region64: #{tpu_custom_call.1} parent=1 // pred_region
      %s119 = ssub.s32 32, 32
      %120 = vsyncadd [#allocation7], %s119
      %s122 = sshll.u32 [#allocation6], 4
      %s123 = int_to_ptr.vmem [resolvable:$true] %s122
      %125 = dma.vmem_to_hbm [thread:$0]  %s123, 32, %s2, [#allocation7]
    $region65: #{tpu_custom_call.1} parent=1 // pred_fallthru
      _
    // Predicated region
    $region66: #{tpu_custom_call.1} parent=1 // pred_check
      _
    $region67: #{tpu_custom_call.1} parent=1 // pred_check_branch
      %127 = sbr.rel (0) target = $region69
    $region68: #{tpu_custom_call.1} parent=1 // pred_region
      %128 = dma.done [#allocation7], 32
    $region69: #{tpu_custom_call.1} parent=1 // pred_fallthru
      _
    %129 = vsyncpa [#allocation7], 1
  %130 = vsyncmov [#allocation3]
  %s131 = vpop.sfrf %130
  %p132 = scmp.eq.s32.totalorder %s131, 0
  %p133 = pneg %p132
  %135 = shalt.err (%p133)
  %s136 = scalar_lea.sflag [#allocation3], 1
  %137 = vsyncmov %s136
  %s138 = vpop.sfrf %137
  %p139 = scmp.eq.s32.totalorder %s138, 0
  %p140 = pneg %p139
  %142 = shalt.err (%p140)

</llo_original>
